<compile_context>
chip_gen: v7x
topology: tpu7x:2x2x1
jax: 0.10.0
libtpu: 0.0.40
codegen_flags: <defaults>
</compile_context>

<pallas_src>
import functools

import jax
import jax.numpy as jnp
from jax.experimental import pallas as pl
from jax.experimental.pallas import tpu as pltpu


def _round_up(x, m):
    return ((x + m - 1) // m) * m


def decoder_kernel(z_ref, w1_ref, b1_ref, w2_ref, b2_ref, out_ref):
    # fc1: z @ W1 + b1   (bf16 operands, f32 accumulate, f32 bias add)
    h = jnp.dot(z_ref[...], w1_ref[...], preferred_element_type=jnp.float32)
    h = h + b1_ref[...]
    # softplus(x) = log(1 + exp(x)), numerically stable, computed in f32
    h = jnp.maximum(h, 0.0) + jnp.log1p(jnp.exp(-jnp.abs(h)))
    # fc21: hidden @ W2 + b2   (bf16 operands, f32 accumulate)
    out = jnp.dot(h.astype(jnp.bfloat16), w2_ref[...],
                  preferred_element_type=jnp.float32)
    out = out + b2_ref[...]
    out_ref[...] = out.astype(out_ref.dtype)


@functools.partial(jax.jit, static_argnames=("tb",))
def decoder_forward(z, w1, b1, w2, b2, *, tb=128):
    """z: [B, z_dim]; w1: [z_dim, hidden]; b1: [1, hidden];
       w2: [hidden, out]; b2: [1, out]  ->  [B, out] (float32)."""
    B, Z = z.shape
    H = w1.shape[1]
    O = w2.shape[1]

    # Pad to TPU-friendly shapes: batch -> multiple of tb, features -> multiple of 128.
    Bp = _round_up(B, tb)
    Zp = _round_up(Z, 128)
    Hp = _round_up(H, 128)
    Op = _round_up(O, 128)

    # Zero padding keeps results exact in the valid region:
    #  - padded z columns hit zero rows of w1  -> no contribution to hidden
    #  - padded hidden columns (softplus(0))   hit zero rows of w2 -> no contribution
    #  - padded batch rows / output columns are sliced off at the end.
    z_p = jnp.pad(z, ((0, Bp - B), (0, Zp - Z))).astype(jnp.bfloat16)
    w1_p = jnp.pad(w1, ((0, Zp - Z), (0, Hp - H))).astype(jnp.bfloat16)
    w2_p = jnp.pad(w2, ((0, Hp - H), (0, Op - O))).astype(jnp.bfloat16)
    b1_p = jnp.pad(b1, ((0, 0), (0, Hp - H))).astype(jnp.float32)
    b2_p = jnp.pad(b2, ((0, 0), (0, Op - O))).astype(jnp.float32)

    grid = (Bp // tb,)
    out_p = pl.pallas_call(
        decoder_kernel,
        out_shape=jax.ShapeDtypeStruct((Bp, Op), jnp.float32),
        grid=grid,
        in_specs=[
            pl.BlockSpec((tb, Zp), lambda i: (i, 0)),   # z tile marches over batch
            pl.BlockSpec((Zp, Hp), lambda i: (0, 0)),   # weights stay resident
            pl.BlockSpec((1, Hp), lambda i: (0, 0)),
            pl.BlockSpec((Hp, Op), lambda i: (0, 0)),
            pl.BlockSpec((1, Op), lambda i: (0, 0)),
        ],
        out_specs=pl.BlockSpec((tb, Op), lambda i: (i, 0)),
        compiler_params=pltpu.CompilerParams(
            dimension_semantics=("parallel",),
            vmem_limit_bytes=32 * 1024 * 1024,
        ),
    )(z_p, w1_p, b1_p, w2_p, b2_p)

    return out_p[:B, :O]


def init_decoder_params(key, z_dim, hidden_dim, output_dim):
    """Deterministic init mirroring nn.Linear default (uniform +-1/sqrt(fan_in)).
    Weights are returned already transposed to [in, out] layout."""
    k1, k2, k3, k4 = jax.random.split(key, 4)
    bound1 = 1.0 / jnp.sqrt(z_dim)
    bound2 = 1.0 / jnp.sqrt(hidden_dim)
    w1 = jax.random.uniform(k1, (z_dim, hidden_dim), jnp.float32, -bound1, bound1)
    b1 = jax.random.uniform(k2, (1, hidden_dim), jnp.float32, -bound1, bound1)
    w2 = jax.random.uniform(k3, (hidden_dim, output_dim), jnp.float32, -bound2, bound2)
    b2 = jax.random.uniform(k4, (1, output_dim), jnp.float32, -bound2, bound2)
    return w1, b1, w2, b2


def reference_forward(z, w1, b1, w2, b2):
    h = jax.nn.softplus(z @ w1 + b1)
    return h @ w2 + b2


if __name__ == "__main__":
    key = jax.random.PRNGKey(0)
    kz, kp = jax.random.split(key)

    batch, z_dim, hidden_dim, output_dim = 256, 16, 32, 64
    z = jax.random.normal(kz, (batch, z_dim), dtype=jnp.float32)
    w1, b1, w2, b2 = init_decoder_params(kp, z_dim, hidden_dim, output_dim)

    out = decoder_forward(z, w1, b1, w2, b2)
    out = jax.block_until_ready(out)

    ref = reference_forward(z, w1, b1, w2, b2)
    assert out.shape == (batch, output_dim)
    # bf16 matmul operands (f32 accumulation) -> loose but safe tolerance vs f32 ref
    assert jnp.allclose(out, ref, atol=2e-2, rtol=2e-2), (
        float(jnp.max(jnp.abs(out - ref))))

    print("KERNEL_OK")
</pallas_src>

<mosaic_0001>
module attributes {stable_mosaic.version = 11 : i64} {
  func.func @decoder_kernel(%arg0: i32, %arg1: memref<128x128xbf16, #tpu.memory_space<vmem>>, %arg2: memref<128x128xbf16, #tpu.memory_space<vmem>>, %arg3: memref<1x128xf32, #tpu.memory_space<vmem>>, %arg4: memref<128x128xbf16, #tpu.memory_space<vmem>>, %arg5: memref<1x128xf32, #tpu.memory_space<vmem>>, %arg6: memref<128x128xf32, #tpu.memory_space<vmem>>) attributes {dimension_semantics = [#tpu.dimension_semantics<parallel>], iteration_bounds = array<i64: 2>, scalar_prefetch = 0 : i64, scratch_operands = 0 : i64, tpu.core_type = #tpu.core_type<tc>, window_params = [{transform_indices = @transform_0, window_bounds = array<i64: 128, 128>}, {pipeline_mode = #tpu.pipeline_mode<synchronous>, transform_indices = @transform_1, window_bounds = array<i64: 128, 128>}, {pipeline_mode = #tpu.pipeline_mode<synchronous>, transform_indices = @transform_2, window_bounds = array<i64: 1, 128>}, {pipeline_mode = #tpu.pipeline_mode<synchronous>, transform_indices = @transform_3, window_bounds = array<i64: 128, 128>}, {pipeline_mode = #tpu.pipeline_mode<synchronous>, transform_indices = @transform_4, window_bounds = array<i64: 1, 128>}, {transform_indices = @transform_5, window_bounds = array<i64: 128, 128>}]} {
    %c0 = arith.constant 0 : index
    %c0_0 = arith.constant 0 : index
    %0 = vector.load %arg1[%c0, %c0_0] : memref<128x128xbf16, #tpu.memory_space<vmem>>, vector<128x128xbf16>
    %c0_1 = arith.constant 0 : index
    %c0_2 = arith.constant 0 : index
    %1 = vector.load %arg2[%c0_1, %c0_2] : memref<128x128xbf16, #tpu.memory_space<vmem>>, vector<128x128xbf16>
    %cst = arith.constant dense<0.000000e+00> : vector<128x128xf32>
    %2 = tpu.matmul %0, %1, %cst {dimension_numbers = #tpu.dot_dimension_numbers<[1], [0], [0], [1], [0, 0, 1, 1], [], []>} : vector<128x128xbf16>, vector<128x128xbf16>, vector<128x128xf32> -> vector<128x128xf32>
    %c0_3 = arith.constant 0 : index
    %c0_4 = arith.constant 0 : index
    %3 = vector.load %arg3[%c0_3, %c0_4] : memref<1x128xf32, #tpu.memory_space<vmem>>, vector<1x128xf32>
    %4 = vector.broadcast %3 : vector<1x128xf32> to vector<128x128xf32>
    %5 = arith.addf %2, %4 : vector<128x128xf32>
    %cst_5 = arith.constant 0.000000e+00 : f32
    %6 = vector.broadcast %cst_5 : f32 to vector<128x128xf32>
    %7 = arith.maximumf %5, %6 : vector<128x128xf32>
    %8 = math.absf %5 : vector<128x128xf32>
    %cst_6 = arith.constant 0.000000e+00 : f32
    %9 = vector.broadcast %cst_6 : f32 to vector<128x128xf32>
    %10 = arith.subf %9, %8 : vector<128x128xf32>
    %11 = math.exp %10 : vector<128x128xf32>
    %12 = math.log1p %11 : vector<128x128xf32>
    %13 = arith.addf %7, %12 : vector<128x128xf32>
    %14 = arith.truncf %13 : vector<128x128xf32> to vector<128x128xbf16>
    %c0_7 = arith.constant 0 : index
    %c0_8 = arith.constant 0 : index
    %15 = vector.load %arg4[%c0_7, %c0_8] : memref<128x128xbf16, #tpu.memory_space<vmem>>, vector<128x128xbf16>
    %cst_9 = arith.constant dense<0.000000e+00> : vector<128x128xf32>
    %16 = tpu.matmul %14, %15, %cst_9 {dimension_numbers = #tpu.dot_dimension_numbers<[1], [0], [0], [1], [0, 0, 1, 1], [], []>} : vector<128x128xbf16>, vector<128x128xbf16>, vector<128x128xf32> -> vector<128x128xf32>
    %c0_10 = arith.constant 0 : index
    %c0_11 = arith.constant 0 : index
    %17 = vector.load %arg5[%c0_10, %c0_11] : memref<1x128xf32, #tpu.memory_space<vmem>>, vector<1x128xf32>
    %18 = vector.broadcast %17 : vector<1x128xf32> to vector<128x128xf32>
    %19 = arith.addf %16, %18 : vector<128x128xf32>
    %c0_12 = arith.constant 0 : index
    %c0_13 = arith.constant 0 : index
    %20 = vector.load %arg6[%c0_12, %c0_13] : memref<128x128xf32, #tpu.memory_space<vmem>>, vector<128x128xf32>
    tpu.vector_store %arg6[%c0_12, %c0_13], %19 {strides = array<i32>} : memref<128x128xf32, #tpu.memory_space<vmem>>, vector<128x128xf32>,
    return
  }
  func.func @transform_0(%arg0: i32) -> (i32, i32) {
    %c0_i32 = arith.constant 0 : i32
    %c0_i32_0 = arith.constant 0 : i32
    return %arg0, %c0_i32 : i32, i32
  }
  func.func @transform_1(%arg0: i32) -> (i32, i32) {
    %c0_i32 = arith.constant 0 : i32
    %c0_i32_0 = arith.constant 0 : i32
    %c0_i32_1 = arith.constant 0 : i32
    return %c0_i32, %c0_i32_0 : i32, i32
  }
  func.func @transform_2(%arg0: i32) -> (i32, i32) {
    %c0_i32 = arith.constant 0 : i32
    %c0_i32_0 = arith.constant 0 : i32
    %c0_i32_1 = arith.constant 0 : i32
    return %c0_i32, %c0_i32_0 : i32, i32
  }
  func.func @transform_3(%arg0: i32) -> (i32, i32) {
    %c0_i32 = arith.constant 0 : i32
    %c0_i32_0 = arith.constant 0 : i32
    %c0_i32_1 = arith.constant 0 : i32
    return %c0_i32, %c0_i32_0 : i32, i32
  }
  func.func @transform_4(%arg0: i32) -> (i32, i32) {
    %c0_i32 = arith.constant 0 : i32
    %c0_i32_0 = arith.constant 0 : i32
    %c0_i32_1 = arith.constant 0 : i32
    return %c0_i32, %c0_i32_0 : i32, i32
  }
  func.func @transform_5(%arg0: i32) -> (i32, i32) {
    %c0_i32 = arith.constant 0 : i32
    %c0_i32_0 = arith.constant 0 : i32
    return %arg0, %c0_i32 : i32, i32
  }
}

</mosaic_0001>

<llo_original>
// kernel: decoder_forward.1
$region0: #{decoder_forward.1}
  #allocation0 [shape = 'u32[]', space=smem, size = 0x4, offset = 0x4, fixed_abs, tag = 'smem constant byte address 0x4 - core index']
  #allocation1 [shape = 'u32[144,128]{1,0:T(1,128)}', space=vmem, size = 0x12000, scoped, tag = 'internal scratch']
  %s0 = inlined_call_operand.vmem [shape: bf16[256,128], index: 0, kind: input, shape index: {}]
  %s1 = inlined_call_operand.vmem [shape: bf16[128,128], index: 1, kind: input, shape index: {}]
  %s2 = inlined_call_operand.vmem [shape: f32[1,128], index: 2, kind: input, shape index: {}]
  %s3 = inlined_call_operand.vmem [shape: bf16[128,128], index: 3, kind: input, shape index: {}]
  %s4 = inlined_call_operand.vmem [shape: f32[1,128], index: 4, kind: input, shape index: {}]
  %s5 = inlined_call_operand.vmem [shape: f32[256,128], index: 5, kind: output, shape index: {}]
  %s6 = sld [smem:[#allocation0]]
  $region53: #{decoder_forward.1} parent=0
    _
  %s8 = ssub.s32 1, %s6
  %s9 = scalar_select 0, %s8, %s6
  loop: start=0, step=1, limit=4
  $region2: #{decoder_forward.1} parent=0 // loop_pre_header
    _
  $region3: #{decoder_forward.1} parent=0 // loop_header
    %s11 = sphi 0, %s15
    %p12 = scmp.ge.s32.totalorder %s11, 4
    %s21 = sphi 0, %s23
    %s24 = sphi 0, %s21
    %s25 = sphi 0, %s24
    %s41 = sphi 0, %s25
    %s45 = sphi 0, %s45
    %s47 = sphi 0, %s45
    %s48 = sphi 0, %s47
    %s62 = sphi 0, %s48
    %s66 = sphi 0, %s66
    %s68 = sphi 0, %s66
    %s69 = sphi 0, %s68
    %s83 = sphi 0, %s69
    %s87 = sphi 0, %s87
    %s89 = sphi 0, %s87
    %s90 = sphi 0, %s89
    %s104 = sphi 0, %s90
    %s108 = sphi 0, %s108
    %s110 = sphi 0, %s108
    %s111 = sphi 0, %s110
    %s125 = sphi 0, %s111
    %s131 = sphi 0, %s133
    %s134 = sphi 0, %s131
    %s135 = sphi 0, %s134
    %s151 = sphi 0, %s135
  $region4: #{decoder_forward.1} parent=0 // loop_header_branch
    %14 = sbr.rel (%p12) target = $region8
  $region5: #{decoder_forward.1} parent=0 // loop_body
    %s16 = ssub.s32 %s11, 1
    %s17 = ssub.s32 %s11, 2
    %s18 = sadd.s32 %s11, 1
    %s19 = ssub.s32 %s11, %s18
    %p20 = scmp.eq.s32.totalorder %s19, 0
    %s22 = sadd.s32 %s21, 1
    %s23 = scalar_select %p20, %s21, %s22
    %p26 = pneg %p20
    %p27 = scmp.eq.s32.totalorder %s11, 1
    %p28 = por %p26, %p27
    %p29 = scmp.ne.s32.totalorder %s21, %s24
    %p30 = scmp.eq.s32.totalorder %s11, 0
    %p31 = por %p29, %p30
    %p32 = scmp.ne.s32.totalorder %s21, %s24
    %p33 = scmp.eq.s32.totalorder %s16, 1
    %p34 = por %p32, %p33
    %p35 = scmp.ne.s32.totalorder %s24, %s25
    %p36 = scmp.eq.s32.totalorder %s16, 0
    %p37 = por %p35, %p36
    %p38 = scmp.ne.s32.totalorder %s24, %s25
    %p39 = scmp.eq.s32.totalorder %s17, 1
    %p40 = por %p38, %p39
    %p42 = scmp.ne.s32.totalorder %s25, %s41
    %p43 = scmp.eq.s32.totalorder %s17, 0
    %p44 = por %p42, %p43
    %s46 = sadd.s32 %s45, 1
    %p49 = scmp.eq.s32.totalorder %s11, 1
    %p50 = scmp.ne.s32.totalorder %s45, %s47
    %p51 = scmp.eq.s32.totalorder %s11, 0
    %p52 = por %p50, %p51
    %p53 = scmp.ne.s32.totalorder %s45, %s47
    %p54 = scmp.eq.s32.totalorder %s16, 1
    %p55 = por %p53, %p54
    %p56 = scmp.ne.s32.totalorder %s47, %s48
    %p57 = scmp.eq.s32.totalorder %s16, 0
    %p58 = por %p56, %p57
    %p59 = scmp.ne.s32.totalorder %s47, %s48
    %p60 = scmp.eq.s32.totalorder %s17, 1
    %p61 = por %p59, %p60
    %p63 = scmp.ne.s32.totalorder %s48, %s62
    %p64 = scmp.eq.s32.totalorder %s17, 0
    %p65 = por %p63, %p64
    %s67 = sadd.s32 %s66, 1
    %p70 = scmp.eq.s32.totalorder %s11, 1
    %p71 = scmp.ne.s32.totalorder %s66, %s68
    %p72 = scmp.eq.s32.totalorder %s11, 0
    %p73 = por %p71, %p72
    %p74 = scmp.ne.s32.totalorder %s66, %s68
    %p75 = scmp.eq.s32.totalorder %s16, 1
    %p76 = por %p74, %p75
    %p77 = scmp.ne.s32.totalorder %s68, %s69
    %p78 = scmp.eq.s32.totalorder %s16, 0
    %p79 = por %p77, %p78
    %p80 = scmp.ne.s32.totalorder %s68, %s69
    %p81 = scmp.eq.s32.totalorder %s17, 1
    %p82 = por %p80, %p81
    %p84 = scmp.ne.s32.totalorder %s69, %s83
    %p85 = scmp.eq.s32.totalorder %s17, 0
    %p86 = por %p84, %p85
    %s88 = sadd.s32 %s87, 1
    %p91 = scmp.eq.s32.totalorder %s11, 1
    %p92 = scmp.ne.s32.totalorder %s87, %s89
    %p93 = scmp.eq.s32.totalorder %s11, 0
    %p94 = por %p92, %p93
    %p95 = scmp.ne.s32.totalorder %s87, %s89
    %p96 = scmp.eq.s32.totalorder %s16, 1
    %p97 = por %p95, %p96
    %p98 = scmp.ne.s32.totalorder %s89, %s90
    %p99 = scmp.eq.s32.totalorder %s16, 0
    %p100 = por %p98, %p99
    %p101 = scmp.ne.s32.totalorder %s89, %s90
    %p102 = scmp.eq.s32.totalorder %s17, 1
    %p103 = por %p101, %p102
    %p105 = scmp.ne.s32.totalorder %s90, %s104
    %p106 = scmp.eq.s32.totalorder %s17, 0
    %p107 = por %p105, %p106
    %s109 = sadd.s32 %s108, 1
    %p112 = scmp.eq.s32.totalorder %s11, 1
    %p113 = scmp.ne.s32.totalorder %s108, %s110
    %p114 = scmp.eq.s32.totalorder %s11, 0
    %p115 = por %p113, %p114
    %p116 = scmp.ne.s32.totalorder %s108, %s110
    %p117 = scmp.eq.s32.totalorder %s16, 1
    %p118 = por %p116, %p117
    %p119 = scmp.ne.s32.totalorder %s110, %s111
    %p120 = scmp.eq.s32.totalorder %s16, 0
    %p121 = por %p119, %p120
    %p122 = scmp.ne.s32.totalorder %s110, %s111
    %p123 = scmp.eq.s32.totalorder %s17, 1
    %p124 = por %p122, %p123
    %p126 = scmp.ne.s32.totalorder %s111, %s125
    %p127 = scmp.eq.s32.totalorder %s17, 0
    %p128 = por %p126, %p127
    %s129 = ssub.s32 %s11, %s18
    %p130 = scmp.eq.s32.totalorder %s129, 0
    %s132 = sadd.s32 %s131, 1
    %s133 = scalar_select %p130, %s131, %s132
    %p136 = pneg %p130
    %p137 = scmp.eq.s32.totalorder %s11, 1
    %p138 = por %p136, %p137
    %p139 = scmp.ne.s32.totalorder %s131, %s134
    %p140 = scmp.eq.s32.totalorder %s11, 0
    %p141 = por %p139, %p140
    %p142 = scmp.ne.s32.totalorder %s131, %s134
    %p143 = scmp.eq.s32.totalorder %s16, 1
    %p144 = por %p142, %p143
    %p145 = scmp.ne.s32.totalorder %s134, %s135
    %p146 = scmp.eq.s32.totalorder %s16, 0
    %p147 = por %p145, %p146
    %p148 = scmp.ne.s32.totalorder %s134, %s135
    %p149 = scmp.eq.s32.totalorder %s17, 1
    %p150 = por %p148, %p149
    %p152 = scmp.ne.s32.totalorder %s135, %s151
    %p153 = scmp.eq.s32.totalorder %s17, 0
    %p154 = por %p152, %p153
    %p155 = scmp.le.s32.totalorder 1, %s11
    %p156 = scmp.lt.s32.totalorder %s11, 3
    %p157 = pnand %p155, %p156
    %p158 = pneg %p157
    // Predicated region
    $region9: #{decoder_forward.1} parent=5 // pred_check
      _
    $region10: #{decoder_forward.1} parent=5 // pred_check_branch
      %160 = sbr.rel (%p157) target = $region12
    $region11: #{decoder_forward.1} parent=5 // pred_region
      %s161 = ssub.s32 %s11, 1
      // Predicated region
      $region13: #{decoder_forward.1} parent=11 // pred_check
        %p162 = pneg %p58
      $region14: #{decoder_forward.1} parent=11 // pred_check_branch
        %164 = sbr.rel (%p162) target = $region16
      $region15: #{decoder_forward.1} parent=11 // pred_region
        _
      $region16: #{decoder_forward.1} parent=11 // pred_fallthru
        _
      // Predicated region
      $region17: #{decoder_forward.1} parent=11 // pred_check
        %p165 = pneg %p79
      $region18: #{decoder_forward.1} parent=11 // pred_check_branch
        %167 = sbr.rel (%p165) target = $region20
      $region19: #{decoder_forward.1} parent=11 // pred_region
        _
      $region20: #{decoder_forward.1} parent=11 // pred_fallthru
        _
      // Predicated region
      $region21: #{decoder_forward.1} parent=11 // pred_check
        %p168 = pneg %p100
      $region22: #{decoder_forward.1} parent=11 // pred_check_branch
        %170 = sbr.rel (%p168) target = $region24
      $region23: #{decoder_forward.1} parent=11 // pred_region
        _
      $region24: #{decoder_forward.1} parent=11 // pred_fallthru
        _
      // Predicated region
      $region25: #{decoder_forward.1} parent=11 // pred_check
        %p171 = pneg %p121
      $region26: #{decoder_forward.1} parent=11 // pred_check_branch
        %173 = sbr.rel (%p171) target = $region28
      $region27: #{decoder_forward.1} parent=11 // pred_region
        _
      $region28: #{decoder_forward.1} parent=11 // pred_fallthru
        _
    $region12: #{decoder_forward.1} parent=5 // pred_fallthru
      _
    %p174 = scmp.lt.s32.totalorder %s11, 2
    // Predicated region
    $region29: #{decoder_forward.1} parent=5 // pred_check
      %p175 = pneg %p174
    $region30: #{decoder_forward.1} parent=5 // pred_check_branch
      %177 = sbr.rel (%p175) target = $region32
    $region31: #{decoder_forward.1} parent=5 // pred_region
      // Predicated region
      $region33: #{decoder_forward.1} parent=31 // pred_check
        %p178 = pneg %p31
      $region34: #{decoder_forward.1} parent=31 // pred_check_branch
        %180 = sbr.rel (%p178) target = $region36
      $region35: #{decoder_forward.1} parent=31 // pred_region
        %s181 = smul.u32 16, %s11
        %p182 = scmp.lt.s32.totalorder %s181, 31
        %s183 = scalar_select %p182, %s181, 31
        %s184 = smul.addr %s183, 4
        %s185 = scalar_lea.vmem %s0, %s184
        %s186 = smul.u32 16, %s11
      $region36: #{decoder_forward.1} parent=31 // pred_fallthru
        _
    $region32: #{decoder_forward.1} parent=5 // pred_fallthru
      _
    %p187 = scmp.le.s32.totalorder 1, %s11
    %p188 = scmp.lt.s32.totalorder %s11, 3
    %p189 = pnand %p187, %p188
    %p190 = pneg %p189
    // Predicated region
    $region37: #{decoder_forward.1} parent=5 // pred_check
      _
    $region38: #{decoder_forward.1} parent=5 // pred_check_branch
      %192 = sbr.rel (%p189) target = $region40
    $region39: #{decoder_forward.1} parent=5 // pred_region
      %s193 = ssub.s32 %s11, 1
      %s194 = smul.u32 16, %s16
      %p195 = scmp.lt.s32.totalorder %s194, 31
      %s196 = scalar_select %p195, %s194, 31
      %s197 = smul.addr %s196, 4
      %s198 = scalar_lea.vmem %s0, %s197
      %p199 = pneg %p37
      %p200 = pneg %p34
      %p201 = pneg %p58
      %p202 = pneg %p55
      %p203 = pneg %p79
      %p204 = pneg %p76
      %p205 = pneg %p100
      %p206 = pneg %p97
      %p207 = pneg %p121
      %p208 = pneg %p118
      %p209 = pneg %p147
      %p210 = pneg %p144
      %s211 = smul.u32 16, %s16
      %p212 = scmp.lt.s32.totalorder %s211, 31
      %s213 = scalar_select %p212, %s211, 31
      %s214 = smul.addr %s213, 8
      %s215 = scalar_lea.vmem %s5, %s214
      %s216 = smul.u32 16, %s16
      %p217 = scmp.lt.s32.totalorder %s216, 31
      %s218 = scalar_select %p217, %s216, 31
      %s219 = smul.addr %s218, 4
      %s220 = scalar_lea.vmem %s0, %s219
      %s221 = smul.u32 16, %s16
      %s222 = smul.u32 16, %s16
      %p223 = scmp.lt.s32.totalorder %s222, 31
      %s224 = scalar_select %p223, %s222, 31
      %s225 = smul.addr %s224, 8
      %s226 = scalar_lea.vmem %s5, %s225
      %s227 = smul.u32 16, %s16
      %v229 = vld [vmem:[%s220] sm:$0xf]
      %v230 = vld [vmem:[%s220 + $0x4] sm:$0xf]
      %v231 = vld [vmem:[%s220 + $0x8] sm:$0xf]
      %v232 = vld [vmem:[%s220 + $0xc] sm:$0xf]
      %v233 = vld [vmem:[%s220 + $0x10] sm:$0xf]
      %v234 = vld [vmem:[%s220 + $0x14] sm:$0xf]
      %v235 = vld [vmem:[%s220 + $0x18] sm:$0xf]
      %v236 = vld [vmem:[%s220 + $0x1c] sm:$0xf]
      %v237 = vld [vmem:[%s220 + $0x20] sm:$0xf]
      %v238 = vld [vmem:[%s220 + $0x24] sm:$0xf]
      %v239 = vld [vmem:[%s220 + $0x28] sm:$0xf]
      %v240 = vld [vmem:[%s220 + $0x2c] sm:$0xf]
      %v241 = vld [vmem:[%s220 + $0x30] sm:$0xf]
      %v242 = vld [vmem:[%s220 + $0x34] sm:$0xf]
      %v243 = vld [vmem:[%s220 + $0x38] sm:$0xf]
      %v244 = vld [vmem:[%s220 + $0x3c] sm:$0xf]
      %v245 = vld [vmem:[%s1] sm:$0xf]
      %v246 = vld [vmem:[%s1 + $0x4] sm:$0xf]
      %v247 = vld [vmem:[%s1 + $0x8] sm:$0xf]
      %v248 = vld [vmem:[%s1 + $0xc] sm:$0xf]
      %v249 = vld [vmem:[%s1 + $0x10] sm:$0xf]
      %v250 = vld [vmem:[%s1 + $0x14] sm:$0xf]
      %v251 = vld [vmem:[%s1 + $0x18] sm:$0xf]
      %v252 = vld [vmem:[%s1 + $0x1c] sm:$0xf]
      %v253 = vld [vmem:[%s1 + $0x20] sm:$0xf]
      %v254 = vld [vmem:[%s1 + $0x24] sm:$0xf]
      %v255 = vld [vmem:[%s1 + $0x28] sm:$0xf]
      %v256 = vld [vmem:[%s1 + $0x2c] sm:$0xf]
      %v257 = vld [vmem:[%s1 + $0x30] sm:$0xf]
      %v258 = vld [vmem:[%s1 + $0x34] sm:$0xf]
      %v259 = vld [vmem:[%s1 + $0x38] sm:$0xf]
      %v260 = vld [vmem:[%s1 + $0x3c] sm:$0xf]
      %v261 = vld [vmem:[%s2] sm:$0x1]
      %v263 = vlaneseq
      %v264 = vshrl.u32 %v263, 7
      %v265 = vsub.s32 0, %v264
      %v266 = vrot.slane %v261, %v265
      %v284 = vunpack.c.l.b16 %v229
      %v285 = vunpack.c.l.b16 %v230
      %v286 = vunpack.c.l.b16 %v231
      %v287 = vunpack.c.l.b16 %v232
      %v288 = vunpack.c.l.b16 %v233
      %v289 = vunpack.c.l.b16 %v234
      %v290 = vunpack.c.l.b16 %v235
      %v291 = vunpack.c.l.b16 %v236
      %v292 = vunpack.c.l.b16 %v237
      %v293 = vunpack.c.l.b16 %v238
      %v294 = vunpack.c.l.b16 %v239
      %v295 = vunpack.c.l.b16 %v240
      %v296 = vunpack.c.l.b16 %v241
      %v297 = vunpack.c.l.b16 %v242
      %v298 = vunpack.c.l.b16 %v243
      %v299 = vunpack.c.l.b16 %v244
      %v300 = vpack.c.b16 %v285, %v284
      %v301 = vpack.c.b16 %v287, %v286
      %v302 = vpack.c.b16 %v289, %v288
      %v303 = vpack.c.b16 %v291, %v290
      %v304 = vpack.c.b16 %v293, %v292
      %v305 = vpack.c.b16 %v295, %v294
      %v306 = vpack.c.b16 %v297, %v296
      %v307 = vpack.c.b16 %v299, %v298
      %v332 = vunpack.c.l.b16 %v245
      %v333 = vunpack.c.l.b16 %v246
      %v334 = vunpack.c.l.b16 %v247
      %v335 = vunpack.c.l.b16 %v248
      %v336 = vunpack.c.l.b16 %v249
      %v337 = vunpack.c.l.b16 %v250
      %v338 = vunpack.c.l.b16 %v251
      %v339 = vunpack.c.l.b16 %v252
      %v340 = vunpack.c.l.b16 %v253
      %v341 = vunpack.c.l.b16 %v254
      %v342 = vunpack.c.l.b16 %v255
      %v343 = vunpack.c.l.b16 %v256
      %v344 = vunpack.c.l.b16 %v257
      %v345 = vunpack.c.l.b16 %v258
      %v346 = vunpack.c.l.b16 %v259
      %v347 = vunpack.c.l.b16 %v260
      %v348 = vpack.c.b16 %v333, %v332
      %v349 = vpack.c.b16 %v335, %v334
      %v350 = vpack.c.b16 %v337, %v336
      %v351 = vpack.c.b16 %v339, %v338
      %v352 = vpack.c.b16 %v341, %v340
      %v353 = vpack.c.b16 %v343, %v342
      %v354 = vpack.c.b16 %v345, %v344
      %v355 = vpack.c.b16 %v347, %v346
      %364 = vmatprep.subr.bf16.mxu0 0
      %365 = vmatpush1.bf16.msra.mxu0 %v348
      %366 = vmatprep.subr.bf16.mxu0 0
      %367 = vmatpush1.bf16.msra.mxu0 %v349
      %368 = vmatprep.subr.bf16.mxu0 0
      %369 = vmatpush1.bf16.msra.mxu0 %v350
      %370 = vmatprep.subr.bf16.mxu0 0
      %371 = vmatpush1.bf16.msra.mxu0 %v351
      %372 = vmatprep.subr.bf16.mxu0 0
      %373 = vmatpush1.bf16.msra.mxu0 %v352
      %374 = vmatprep.subr.bf16.mxu0 0
      %375 = vmatpush1.bf16.msra.mxu0 %v353
      %376 = vmatprep.subr.bf16.mxu0 0
      %377 = vmatpush1.bf16.msra.mxu0 %v354
      %378 = vmatprep.subr.bf16.mxu0 0
      %379 = vmatpush1.bf16.msra.mxu0 %v355
      %380 = vmatprep.subr.bf16.mxu0 0
      %381 = vmatpush1.bf16.msra.mxu0 0
      %382 = vmatprep.subr.bf16.mxu0 0
      %383 = vmatpush1.bf16.msra.mxu0 0
      %384 = vmatprep.subr.bf16.mxu0 0
      %385 = vmatpush1.bf16.msra.mxu0 0
      %386 = vmatprep.subr.bf16.mxu0 0
      %387 = vmatpush1.bf16.msra.mxu0 0
      %388 = vmatprep.subr.bf16.mxu0 0
      %389 = vmatpush1.bf16.msra.mxu0 0
      %390 = vmatprep.subr.bf16.mxu0 0
      %391 = vmatpush1.bf16.msra.mxu0 0
      %392 = vmatprep.subr.bf16.mxu0 0
      %393 = vmatpush1.bf16.msra.mxu0 0
      %394 = vmatprep.subr.bf16.mxu0 0
      %395 = vmatpush1.bf16.msra.mxu0 0
      %396 = vmatprep.mubr.bf16.mxu0 0
      %397 = vmatmul.mubr.bf16.gmra.mrb[0].mxu0 %v300
      %v398 = vpop.f32.mrb[0].mxu0
      %v399 = vadd.f32 %v266, %v398
      %v400 = vpop.f32.mrb[0].mxu0
      %v401 = vpop.f32.mrb[0].mxu0
      %v402 = vadd.f32 %v266, %v401
      %v403 = vpop.f32.mrb[0].mxu0
      %404 = vmatprep.mubr.bf16.mxu0 0
      %405 = vmatmul.mubr.bf16.gmra.mrb[0].mxu0 %v301
      %v406 = vpop.f32.mrb[0].mxu0
      %v407 = vadd.f32 %v266, %v406
      %v408 = vpop.f32.mrb[0].mxu0
      %v409 = vpop.f32.mrb[0].mxu0
      %v410 = vadd.f32 %v266, %v409
      %v411 = vpop.f32.mrb[0].mxu0
      %412 = vmatprep.mubr.bf16.mxu0 0
      %413 = vmatmul.mubr.bf16.gmra.mrb[0].mxu0 %v302
      %v414 = vpop.f32.mrb[0].mxu0
      %v415 = vadd.f32 %v266, %v414
      %v416 = vpop.f32.mrb[0].mxu0
      %v417 = vpop.f32.mrb[0].mxu0
      %v418 = vadd.f32 %v266, %v417
      %v419 = vpop.f32.mrb[0].mxu0
      %420 = vmatprep.mubr.bf16.mxu0 0
      %421 = vmatmul.mubr.bf16.gmra.mrb[0].mxu0 %v303
      %v422 = vpop.f32.mrb[0].mxu0
      %v423 = vadd.f32 %v266, %v422
      %v424 = vpop.f32.mrb[0].mxu0
      %v425 = vpop.f32.mrb[0].mxu0
      %v426 = vadd.f32 %v266, %v425
      %v427 = vpop.f32.mrb[0].mxu0
      %428 = vmatprep.mubr.bf16.mxu0 0
      %429 = vmatmul.mubr.bf16.gmra.mrb[0].mxu0 %v304
      %v430 = vpop.f32.mrb[0].mxu0
      %v431 = vadd.f32 %v266, %v430
      %v432 = vpop.f32.mrb[0].mxu0
      %v433 = vpop.f32.mrb[0].mxu0
      %v434 = vadd.f32 %v266, %v433
      %v435 = vpop.f32.mrb[0].mxu0
      %436 = vmatprep.mubr.bf16.mxu0 0
      %437 = vmatmul.mubr.bf16.gmra.mrb[0].mxu0 %v305
      %v438 = vpop.f32.mrb[0].mxu0
      %v439 = vadd.f32 %v266, %v438
      %v440 = vpop.f32.mrb[0].mxu0
      %v441 = vpop.f32.mrb[0].mxu0
      %v442 = vadd.f32 %v266, %v441
      %v443 = vpop.f32.mrb[0].mxu0
      %444 = vmatprep.mubr.bf16.mxu0 0
      %445 = vmatmul.mubr.bf16.gmra.mrb[0].mxu0 %v306
      %v446 = vpop.f32.mrb[0].mxu0
      %v447 = vadd.f32 %v266, %v446
      %v448 = vpop.f32.mrb[0].mxu0
      %v449 = vpop.f32.mrb[0].mxu0
      %v450 = vadd.f32 %v266, %v449
      %v451 = vpop.f32.mrb[0].mxu0
      %452 = vmatprep.mubr.bf16.mxu0 0
      %453 = vmatmul.mubr.bf16.gmra.mrb[0].mxu0 %v307
      %v454 = vpop.f32.mrb[0].mxu0
      %v455 = vadd.f32 %v266, %v454
      %v456 = vpop.f32.mrb[0].mxu0
      %v457 = vpop.f32.mrb[0].mxu0
      %v458 = vadd.f32 %v266, %v457
      %v459 = vpop.f32.mrb[0].mxu0
      %460 = vdwg.mxu0
      %v461 = vmax.f32 %v399, 0.0
      %v462 = vmax.f32 %v402, 0.0
      %v463 = vmax.f32 %v407, 0.0
      %v464 = vmax.f32 %v410, 0.0
      %v465 = vmax.f32 %v415, 0.0
      %v466 = vmax.f32 %v418, 0.0
      %v467 = vmax.f32 %v423, 0.0
      %v468 = vmax.f32 %v426, 0.0
      %v469 = vmax.f32 %v431, 0.0
      %v470 = vmax.f32 %v434, 0.0
      %v471 = vmax.f32 %v439, 0.0
      %v472 = vmax.f32 %v442, 0.0
      %v473 = vmax.f32 %v447, 0.0
      %v474 = vmax.f32 %v450, 0.0
      %v475 = vmax.f32 %v455, 0.0
      %v476 = vmax.f32 %v458, 0.0
      %v477 = vand.u32 2147483647, %v399
      %v478 = vand.u32 2147483647, %v402
      %v479 = vand.u32 2147483647, %v407
      %v480 = vand.u32 2147483647, %v410
      %v481 = vand.u32 2147483647, %v415
      %v482 = vand.u32 2147483647, %v418
      %v483 = vand.u32 2147483647, %v423
      %v484 = vand.u32 2147483647, %v426
      %v485 = vand.u32 2147483647, %v431
      %v486 = vand.u32 2147483647, %v434
      %v487 = vand.u32 2147483647, %v439
      %v488 = vand.u32 2147483647, %v442
      %v489 = vand.u32 2147483647, %v447
      %v490 = vand.u32 2147483647, %v450
      %v491 = vand.u32 2147483647, %v455
      %v492 = vand.u32 2147483647, %v458
      %v493 = vsub.f32 0.0, %v477
      %v494 = vsub.f32 0.0, %v478
      %v495 = vsub.f32 0.0, %v479
      %v496 = vsub.f32 0.0, %v480
      %v497 = vsub.f32 0.0, %v481
      %v498 = vsub.f32 0.0, %v482
      %v499 = vsub.f32 0.0, %v483
      %v500 = vsub.f32 0.0, %v484
      %v501 = vsub.f32 0.0, %v485
      %v502 = vsub.f32 0.0, %v486
      %v503 = vsub.f32 0.0, %v487
      %v504 = vsub.f32 0.0, %v488
      %v505 = vsub.f32 0.0, %v489
      %v506 = vsub.f32 0.0, %v490
      %v507 = vsub.f32 0.0, %v491
      %v508 = vsub.f32 0.0, %v492
      %v509 = vmul.f32 %v493, 1.442695
      %v510 = vpow.pop %v509
      %v511 = vmul.f32 %v494, 1.442695
      %v512 = vpow.pop %v511
      %v513 = vmul.f32 %v495, 1.442695
      %v514 = vpow.pop %v513
      %v515 = vmul.f32 %v496, 1.442695
      %v516 = vpow.pop %v515
      %v517 = vmul.f32 %v497, 1.442695
      %v518 = vpow.pop %v517
      %v519 = vmul.f32 %v498, 1.442695
      %v520 = vpow.pop %v519
      %v521 = vmul.f32 %v499, 1.442695
      %v522 = vpow.pop %v521
      %v523 = vmul.f32 %v500, 1.442695
      %v524 = vpow.pop %v523
      %v525 = vmul.f32 %v501, 1.442695
      %v526 = vpow.pop %v525
      %v527 = vmul.f32 %v502, 1.442695
      %v528 = vpow.pop %v527
      %v529 = vmul.f32 %v503, 1.442695
      %v530 = vpow.pop %v529
      %v531 = vmul.f32 %v504, 1.442695
      %v532 = vpow.pop %v531
      %v533 = vmul.f32 %v505, 1.442695
      %v534 = vpow.pop %v533
      %v535 = vmul.f32 %v506, 1.442695
      %v536 = vpow.pop %v535
      %v537 = vmul.f32 %v507, 1.442695
      %v538 = vpow.pop %v537
      %v539 = vmul.f32 %v508, 1.442695
      %v540 = vpow.pop %v539
      %v541 = vadd.f32 %v510, 1.0
      %v542 = vlog2.pop %v541
      %v543 = vmul.f32 %v542, 0.6931472
      %v544 = vmul.f32 -0.5, %v510
      %v545 = vadd.f32 %v544, 1.0
      %v546 = vmul.f32 %v545, %v510
      %v547 = vand.u32 2147483647, %v510
      %vm548 = vcmp.lt.f32.partialorder %v547, 0.0004427343
      %v549 = vsel %vm548, %v546, %v543
      %v550 = vadd.f32 %v512, 1.0
      %v551 = vlog2.pop %v550
      %v552 = vmul.f32 %v551, 0.6931472
      %v553 = vmul.f32 -0.5, %v512
      %v554 = vadd.f32 %v553, 1.0
      %v555 = vmul.f32 %v554, %v512
      %v556 = vand.u32 2147483647, %v512
      %vm557 = vcmp.lt.f32.partialorder %v556, 0.0004427343
      %v558 = vsel %vm557, %v555, %v552
      %v559 = vadd.f32 %v514, 1.0
      %v560 = vlog2.pop %v559
      %v561 = vmul.f32 %v560, 0.6931472
      %v562 = vmul.f32 -0.5, %v514
      %v563 = vadd.f32 %v562, 1.0
      %v564 = vmul.f32 %v563, %v514
      %v565 = vand.u32 2147483647, %v514
      %vm566 = vcmp.lt.f32.partialorder %v565, 0.0004427343
      %v567 = vsel %vm566, %v564, %v561
      %v568 = vadd.f32 %v516, 1.0
      %v569 = vlog2.pop %v568
      %v570 = vmul.f32 %v569, 0.6931472
      %v571 = vmul.f32 -0.5, %v516
      %v572 = vadd.f32 %v571, 1.0
      %v573 = vmul.f32 %v572, %v516
      %v574 = vand.u32 2147483647, %v516
      %vm575 = vcmp.lt.f32.partialorder %v574, 0.0004427343
      %v576 = vsel %vm575, %v573, %v570
      %v577 = vadd.f32 %v518, 1.0
      %v578 = vlog2.pop %v577
      %v579 = vmul.f32 %v578, 0.6931472
      %v580 = vmul.f32 -0.5, %v518
      %v581 = vadd.f32 %v580, 1.0
      %v582 = vmul.f32 %v581, %v518
      %v583 = vand.u32 2147483647, %v518
      %vm584 = vcmp.lt.f32.partialorder %v583, 0.0004427343
      %v585 = vsel %vm584, %v582, %v579
      %v586 = vadd.f32 %v520, 1.0
      %v587 = vlog2.pop %v586
      %v588 = vmul.f32 %v587, 0.6931472
      %v589 = vmul.f32 -0.5, %v520
      %v590 = vadd.f32 %v589, 1.0
      %v591 = vmul.f32 %v590, %v520
      %v592 = vand.u32 2147483647, %v520
      %vm593 = vcmp.lt.f32.partialorder %v592, 0.0004427343
      %v594 = vsel %vm593, %v591, %v588
      %v595 = vadd.f32 %v522, 1.0
      %v596 = vlog2.pop %v595
      %v597 = vmul.f32 %v596, 0.6931472
      %v598 = vmul.f32 -0.5, %v522
      %v599 = vadd.f32 %v598, 1.0
      %v600 = vmul.f32 %v599, %v522
      %v601 = vand.u32 2147483647, %v522
      %vm602 = vcmp.lt.f32.partialorder %v601, 0.0004427343
      %v603 = vsel %vm602, %v600, %v597
      %v604 = vadd.f32 %v524, 1.0
      %v605 = vlog2.pop %v604
      %v606 = vmul.f32 %v605, 0.6931472
      %v607 = vmul.f32 -0.5, %v524
      %v608 = vadd.f32 %v607, 1.0
      %v609 = vmul.f32 %v608, %v524
      %v610 = vand.u32 2147483647, %v524
      %vm611 = vcmp.lt.f32.partialorder %v610, 0.0004427343
      %v612 = vsel %vm611, %v609, %v606
      %v613 = vadd.f32 %v526, 1.0
      %v614 = vlog2.pop %v613
      %v615 = vmul.f32 %v614, 0.6931472
      %v616 = vmul.f32 -0.5, %v526
      %v617 = vadd.f32 %v616, 1.0
      %v618 = vmul.f32 %v617, %v526
      %v619 = vand.u32 2147483647, %v526
      %vm620 = vcmp.lt.f32.partialorder %v619, 0.0004427343
      %v621 = vsel %vm620, %v618, %v615
      %v622 = vadd.f32 %v528, 1.0
      %v623 = vlog2.pop %v622
      %v624 = vmul.f32 %v623, 0.6931472
      %v625 = vmul.f32 -0.5, %v528
      %v626 = vadd.f32 %v625, 1.0
      %v627 = vmul.f32 %v626, %v528
      %v628 = vand.u32 2147483647, %v528
      %vm629 = vcmp.lt.f32.partialorder %v628, 0.0004427343
      %v630 = vsel %vm629, %v627, %v624
      %v631 = vadd.f32 %v530, 1.0
      %v632 = vlog2.pop %v631
      %v633 = vmul.f32 %v632, 0.6931472
      %v634 = vmul.f32 -0.5, %v530
      %v635 = vadd.f32 %v634, 1.0
      %v636 = vmul.f32 %v635, %v530
      %v637 = vand.u32 2147483647, %v530
      %vm638 = vcmp.lt.f32.partialorder %v637, 0.0004427343
      %v639 = vsel %vm638, %v636, %v633
      %v640 = vadd.f32 %v532, 1.0
      %v641 = vlog2.pop %v640
      %v642 = vmul.f32 %v641, 0.6931472
      %v643 = vmul.f32 -0.5, %v532
      %v644 = vadd.f32 %v643, 1.0
      %v645 = vmul.f32 %v644, %v532
      %v646 = vand.u32 2147483647, %v532
      %vm647 = vcmp.lt.f32.partialorder %v646, 0.0004427343
      %v648 = vsel %vm647, %v645, %v642
      %v649 = vadd.f32 %v534, 1.0
      %v650 = vlog2.pop %v649
      %v651 = vmul.f32 %v650, 0.6931472
      %v652 = vmul.f32 -0.5, %v534
      %v653 = vadd.f32 %v652, 1.0
      %v654 = vmul.f32 %v653, %v534
      %v655 = vand.u32 2147483647, %v534
      %vm656 = vcmp.lt.f32.partialorder %v655, 0.0004427343
      %v657 = vsel %vm656, %v654, %v651
      %v658 = vadd.f32 %v536, 1.0
      %v659 = vlog2.pop %v658
      %v660 = vmul.f32 %v659, 0.6931472
      %v661 = vmul.f32 -0.5, %v536
      %v662 = vadd.f32 %v661, 1.0
      %v663 = vmul.f32 %v662, %v536
      %v664 = vand.u32 2147483647, %v536
      %vm665 = vcmp.lt.f32.partialorder %v664, 0.0004427343
      %v666 = vsel %vm665, %v663, %v660
      %v667 = vadd.f32 %v538, 1.0
      %v668 = vlog2.pop %v667
      %v669 = vmul.f32 %v668, 0.6931472
      %v670 = vmul.f32 -0.5, %v538
      %v671 = vadd.f32 %v670, 1.0
      %v672 = vmul.f32 %v671, %v538
      %v673 = vand.u32 2147483647, %v538
      %vm674 = vcmp.lt.f32.partialorder %v673, 0.0004427343
      %v675 = vsel %vm674, %v672, %v669
      %v676 = vadd.f32 %v540, 1.0
      %v677 = vlog2.pop %v676
      %v678 = vmul.f32 %v677, 0.6931472
      %v679 = vmul.f32 -0.5, %v540
      %v680 = vadd.f32 %v679, 1.0
      %v681 = vmul.f32 %v680, %v540
      %v682 = vand.u32 2147483647, %v540
      %vm683 = vcmp.lt.f32.partialorder %v682, 0.0004427343
      %v684 = vsel %vm683, %v681, %v678
      %v685 = vadd.f32 %v461, %v549
      %v686 = vadd.f32 %v462, %v558
      %v687 = vadd.f32 %v463, %v567
      %v688 = vadd.f32 %v464, %v576
      %v689 = vadd.f32 %v465, %v585
      %v690 = vadd.f32 %v466, %v594
      %v691 = vadd.f32 %v467, %v603
      %v692 = vadd.f32 %v468, %v612
      %v693 = vadd.f32 %v469, %v621
      %v694 = vadd.f32 %v470, %v630
      %v695 = vadd.f32 %v471, %v639
      %v696 = vadd.f32 %v472, %v648
      %v697 = vadd.f32 %v473, %v657
      %v698 = vadd.f32 %v474, %v666
      %v699 = vadd.f32 %v475, %v675
      %v700 = vadd.f32 %v476, %v684
      %v701 = vpack.c.bf16 %v686, %v685
      %v702 = vpack.c.bf16 %v688, %v687
      %v703 = vpack.c.bf16 %v690, %v689
      %v704 = vpack.c.bf16 %v692, %v691
      %v705 = vpack.c.bf16 %v694, %v693
      %v706 = vpack.c.bf16 %v696, %v695
      %v707 = vpack.c.bf16 %v698, %v697
      %v708 = vpack.c.bf16 %v700, %v699
      %v709 = vld [vmem:[%s3] sm:$0xf]
      %v710 = vld [vmem:[%s3 + $0x4] sm:$0xf]
      %v711 = vld [vmem:[%s3 + $0x8] sm:$0xf]
      %v712 = vld [vmem:[%s3 + $0xc] sm:$0xf]
      %v713 = vld [vmem:[%s3 + $0x10] sm:$0xf]
      %v714 = vld [vmem:[%s3 + $0x14] sm:$0xf]
      %v715 = vld [vmem:[%s3 + $0x18] sm:$0xf]
      %v716 = vld [vmem:[%s3 + $0x1c] sm:$0xf]
      %v717 = vld [vmem:[%s3 + $0x20] sm:$0xf]
      %v718 = vld [vmem:[%s3 + $0x24] sm:$0xf]
      %v719 = vld [vmem:[%s3 + $0x28] sm:$0xf]
      %v720 = vld [vmem:[%s3 + $0x2c] sm:$0xf]
      %v721 = vld [vmem:[%s3 + $0x30] sm:$0xf]
      %v722 = vld [vmem:[%s3 + $0x34] sm:$0xf]
      %v723 = vld [vmem:[%s3 + $0x38] sm:$0xf]
      %v724 = vld [vmem:[%s3 + $0x3c] sm:$0xf]
      %v725 = vld [vmem:[%s4] sm:$0x1]
      %v727 = vlaneseq
      %v728 = vshrl.u32 %v727, 7
      %v729 = vsub.s32 0, %v728
      %v730 = vrot.slane %v725, %v729
      %v748 = vunpack.c.l.b16 %v709
      %v749 = vunpack.c.l.b16 %v710
      %v750 = vunpack.c.l.b16 %v711
      %v751 = vunpack.c.l.b16 %v712
      %v752 = vunpack.c.l.b16 %v713
      %v753 = vunpack.c.l.b16 %v714
      %v754 = vunpack.c.l.b16 %v715
      %v755 = vunpack.c.l.b16 %v716
      %v756 = vunpack.c.l.b16 %v717
      %v757 = vunpack.c.l.b16 %v718
      %v758 = vunpack.c.l.b16 %v719
      %v759 = vunpack.c.l.b16 %v720
      %v760 = vunpack.c.l.b16 %v721
      %v761 = vunpack.c.l.b16 %v722
      %v762 = vunpack.c.l.b16 %v723
      %v763 = vunpack.c.l.b16 %v724
      %v764 = vpack.c.b16 %v749, %v748
      %v765 = vpack.c.b16 %v751, %v750
      %v766 = vpack.c.b16 %v753, %v752
      %v767 = vpack.c.b16 %v755, %v754
      %v768 = vpack.c.b16 %v757, %v756
      %v769 = vpack.c.b16 %v759, %v758
      %v770 = vpack.c.b16 %v761, %v760
      %v771 = vpack.c.b16 %v763, %v762
      %780 = vmatprep.subr.bf16.mxu0 0
      %781 = vmatpush1.bf16.msra.mxu0 %v764
      %782 = vmatprep.subr.bf16.mxu0 0
      %783 = vmatpush1.bf16.msra.mxu0 %v765
      %784 = vmatprep.subr.bf16.mxu0 0
      %785 = vmatpush1.bf16.msra.mxu0 %v766
      %786 = vmatprep.subr.bf16.mxu0 0
      %787 = vmatpush1.bf16.msra.mxu0 %v767
      %788 = vmatprep.subr.bf16.mxu0 0
      %789 = vmatpush1.bf16.msra.mxu0 %v768
      %790 = vmatprep.subr.bf16.mxu0 0
      %791 = vmatpush1.bf16.msra.mxu0 %v769
      %792 = vmatprep.subr.bf16.mxu0 0
      %793 = vmatpush1.bf16.msra.mxu0 %v770
      %794 = vmatprep.subr.bf16.mxu0 0
      %795 = vmatpush1.bf16.msra.mxu0 %v771
      %796 = vmatprep.subr.bf16.mxu0 0
      %797 = vmatpush1.bf16.msra.mxu0 0
      %798 = vmatprep.subr.bf16.mxu0 0
      %799 = vmatpush1.bf16.msra.mxu0 0
      %800 = vmatprep.subr.bf16.mxu0 0
      %801 = vmatpush1.bf16.msra.mxu0 0
      %802 = vmatprep.subr.bf16.mxu0 0
      %803 = vmatpush1.bf16.msra.mxu0 0
      %804 = vmatprep.subr.bf16.mxu0 0
      %805 = vmatpush1.bf16.msra.mxu0 0
      %806 = vmatprep.subr.bf16.mxu0 0
      %807 = vmatpush1.bf16.msra.mxu0 0
      %808 = vmatprep.subr.bf16.mxu0 0
      %809 = vmatpush1.bf16.msra.mxu0 0
      %810 = vmatprep.subr.bf16.mxu0 0
      %811 = vmatpush1.bf16.msra.mxu0 0
      %812 = vmatprep.mubr.bf16.mxu0 0
      %813 = vmatmul.mubr.bf16.gmra.mrb[0].mxu0 %v701
      %v814 = vpop.f32.mrb[0].mxu0
      %v815 = vadd.f32 %v730, %v814
      %v816 = vpop.f32.mrb[0].mxu0
      %v817 = vpop.f32.mrb[0].mxu0
      %v818 = vadd.f32 %v730, %v817
      %v819 = vpop.f32.mrb[0].mxu0
      %820 = vmatprep.mubr.bf16.mxu0 0
      %821 = vmatmul.mubr.bf16.gmra.mrb[0].mxu0 %v702
      %v822 = vpop.f32.mrb[0].mxu0
      %v823 = vadd.f32 %v730, %v822
      %v824 = vpop.f32.mrb[0].mxu0
      %v825 = vpop.f32.mrb[0].mxu0
      %v826 = vadd.f32 %v730, %v825
      %v827 = vpop.f32.mrb[0].mxu0
      %828 = vmatprep.mubr.bf16.mxu0 0
      %829 = vmatmul.mubr.bf16.gmra.mrb[0].mxu0 %v703
      %v830 = vpop.f32.mrb[0].mxu0
      %v831 = vadd.f32 %v730, %v830
      %v832 = vpop.f32.mrb[0].mxu0
      %v833 = vpop.f32.mrb[0].mxu0
      %v834 = vadd.f32 %v730, %v833
      %v835 = vpop.f32.mrb[0].mxu0
      %836 = vmatprep.mubr.bf16.mxu0 0
      %837 = vmatmul.mubr.bf16.gmra.mrb[0].mxu0 %v704
      %v838 = vpop.f32.mrb[0].mxu0
      %v839 = vadd.f32 %v730, %v838
      %v840 = vpop.f32.mrb[0].mxu0
      %v841 = vpop.f32.mrb[0].mxu0
      %v842 = vadd.f32 %v730, %v841
      %v843 = vpop.f32.mrb[0].mxu0
      %844 = vmatprep.mubr.bf16.mxu0 0
      %845 = vmatmul.mubr.bf16.gmra.mrb[0].mxu0 %v705
      %v846 = vpop.f32.mrb[0].mxu0
      %v847 = vadd.f32 %v730, %v846
      %v848 = vpop.f32.mrb[0].mxu0
      %v849 = vpop.f32.mrb[0].mxu0
      %v850 = vadd.f32 %v730, %v849
      %v851 = vpop.f32.mrb[0].mxu0
      %852 = vmatprep.mubr.bf16.mxu0 0
      %853 = vmatmul.mubr.bf16.gmra.mrb[0].mxu0 %v706
      %v854 = vpop.f32.mrb[0].mxu0
      %v855 = vadd.f32 %v730, %v854
      %v856 = vpop.f32.mrb[0].mxu0
      %v857 = vpop.f32.mrb[0].mxu0
      %v858 = vadd.f32 %v730, %v857
      %v859 = vpop.f32.mrb[0].mxu0
      %860 = vmatprep.mubr.bf16.mxu0 0
      %861 = vmatmul.mubr.bf16.gmra.mrb[0].mxu0 %v707
      %v862 = vpop.f32.mrb[0].mxu0
      %v863 = vadd.f32 %v730, %v862
      %v864 = vpop.f32.mrb[0].mxu0
      %v865 = vpop.f32.mrb[0].mxu0
      %v866 = vadd.f32 %v730, %v865
      %v867 = vpop.f32.mrb[0].mxu0
      %868 = vmatprep.mubr.bf16.mxu0 0
      %869 = vmatmul.mubr.bf16.gmra.mrb[0].mxu0 %v708
      %v870 = vpop.f32.mrb[0].mxu0
      %v871 = vadd.f32 %v730, %v870
      %v872 = vpop.f32.mrb[0].mxu0
      %v873 = vpop.f32.mrb[0].mxu0
      %v874 = vadd.f32 %v730, %v873
      %v875 = vpop.f32.mrb[0].mxu0
      %876 = vdwg.mxu0
      %877 = vst [vmem:[%s226] sm:$0xff] %v815
      %878 = vst [vmem:[%s226 + $0x8] sm:$0xff] %v818
      %879 = vst [vmem:[%s226 + $0x10] sm:$0xff] %v823
      %880 = vst [vmem:[%s226 + $0x18] sm:$0xff] %v826
      %881 = vst [vmem:[%s226 + $0x20] sm:$0xff] %v831
      %882 = vst [vmem:[%s226 + $0x28] sm:$0xff] %v834
      %883 = vst [vmem:[%s226 + $0x30] sm:$0xff] %v839
      %884 = vst [vmem:[%s226 + $0x38] sm:$0xff] %v842
      %885 = vst [vmem:[%s226 + $0x40] sm:$0xff] %v847
      %886 = vst [vmem:[%s226 + $0x48] sm:$0xff] %v850
      %887 = vst [vmem:[%s226 + $0x50] sm:$0xff] %v855
      %888 = vst [vmem:[%s226 + $0x58] sm:$0xff] %v858
      %889 = vst [vmem:[%s226 + $0x60] sm:$0xff] %v863
      %890 = vst [vmem:[%s226 + $0x68] sm:$0xff] %v866
      %891 = vst [vmem:[%s226 + $0x70] sm:$0xff] %v871
      %892 = vst [vmem:[%s226 + $0x78] sm:$0xff] %v874
      %s893 = smul.u32 16, %s16
      %p894 = scmp.lt.s32.totalorder %s893, 31
      %s895 = scalar_select %p894, %s893, 31
      %s896 = smul.addr %s895, 8
      %s897 = scalar_lea.vmem %s5, %s896
      // Predicated region
      $region41: #{decoder_forward.1} parent=39 // pred_check
        %p898 = pneg %p144
      $region42: #{decoder_forward.1} parent=39 // pred_check_branch
        %900 = sbr.rel (%p898) target = $region44
      $region43: #{decoder_forward.1} parent=39 // pred_region
        %s901 = smul.u32 16, %s16
      $region44: #{decoder_forward.1} parent=39 // pred_fallthru
        _
    $region40: #{decoder_forward.1} parent=5 // pred_fallthru
      _
    %p902 = scmp.le.s32.totalorder 2, %s11
    // Predicated region
    $region45: #{decoder_forward.1} parent=5 // pred_check
      %p903 = pneg %p902
    $region46: #{decoder_forward.1} parent=5 // pred_check_branch
      %905 = sbr.rel (%p903) target = $region48
    $region47: #{decoder_forward.1} parent=5 // pred_region
      %s906 = ssub.s32 %s11, 2
      // Predicated region
      $region49: #{decoder_forward.1} parent=47 // pred_check
        %p907 = pneg %p150
      $region50: #{decoder_forward.1} parent=47 // pred_check_branch
        %909 = sbr.rel (%p907) target = $region52
      $region51: #{decoder_forward.1} parent=47 // pred_region
        %s910 = smul.u32 16, %s17
        %p911 = scmp.lt.s32.totalorder %s910, 31
        %s912 = scalar_select %p911, %s910, 31
        %s913 = smul.addr %s912, 8
        %s914 = scalar_lea.vmem %s5, %s913
      $region52: #{decoder_forward.1} parent=47 // pred_fallthru
        _
    $region48: #{decoder_forward.1} parent=5 // pred_fallthru
      _
  $region6: #{decoder_forward.1} parent=0 // loop_footer
    %s15 = sadd.s32 1, %s11
  $region7: #{decoder_forward.1} parent=0 // loop_footer_branch
    %10 = sbr.rel target = $region3
  $region8: #{decoder_forward.1} parent=0 // loop_exit
    _

</llo_original>
